<compile_context>
chip_gen: v6e
topology: v6e:2x2x1
jax: 0.10.0
libtpu: 0.0.40
codegen_flags: <defaults>
</compile_context>

<pallas_src>
import math
from math import factorial

import numpy as np
import jax
import jax.numpy as jnp
from jax.experimental import pallas as pl
from jax.experimental.pallas import tpu as pltpu


_TE_MAX = 256     # element tile (sublane axis); multiple of 128 -> valid CDT lane block
_TF_MAX = 1024    # frequency tile (lane axis);  multiple of 128
# ~8-10 live (TE, TF) f32 temps + double-buffered input blocks is ~10-12 MiB at
# (256, 1024): comfortably under this limit on every generation (incl. v7x 64 MiB).
_VMEM_LIMIT_BYTES = 48 * 1024 * 1024


def _round_up(x, m):
    return ((x + m - 1) // m) * m


# ----------------------------------------------------------------------------
# Pallas kernel: non-uniform Fourier transform of a simplex mesh (SimplexFT)
# ----------------------------------------------------------------------------
def _make_nuft_kernel(j, n_dims, n_elem, tile_e, tile_f, need_mask):
    def kernel(p_ref, omT_ref, cdt_ref, out_ref):
        e_step = pl.program_id(1)

        # Output block is revisited across the element (reduction) axis:
        # zero it on the first element step, accumulate afterwards.
        @pl.when(e_step == 0)
        def _init():
            out_ref[...] = jnp.zeros_like(out_ref)

        om = omT_ref[...]                                    # (n_dims, TF)

        # s_k[e, f] = x_k[e] . omega[f]  -- kept as VPU broadcast mul-adds in
        # full f32: the cos/sin arguments are precision critical, and the VPU
        # has slack because the kernel is EUP-bound (cos/sin).  (Moving this to
        # the MXU only pays off once the EUP is no longer the saturated slot.)
        s = []
        for k in range(j + 1):
            pk = p_ref[k]                                    # (TE, n_dims)
            sk = pk[:, 0:1] * om[0:1, :]
            for d in range(1, n_dims):
                sk = sk + pk[:, d:d + 1] * om[d:d + 1, :]
            s.append(sk)                                     # (TE, TF)

        if need_mask:
            # valid-element column mask for the zero-padded element-axis tail
            row = jax.lax.broadcasted_iota(jnp.int32, (tile_e, 1), 0)
            valid = (e_step * tile_e + row) < n_elem

        # Pairwise phase differences computed once; signs are folded into the
        # reciprocal below (fewer materialized full-tile temps — helps v5e's
        # single vector-store slot and the v7x VMEM budget).
        diff = {}
        for a in range(j + 1):
            for b in range(a + 1, j + 1):
                diff[(a, b)] = s[a] - s[b]

        # T[e,f] = sum_k (cos s_k, -sin s_k) / prod_{d=1..j} (s_k - s_{k+d})
        tre = jnp.zeros((tile_e, tile_f), jnp.float32)
        tim = jnp.zeros((tile_e, tile_f), jnp.float32)
        for k in range(j + 1):
            dk = None
            neg = False
            for d in range(1, j + 1):
                m = (k + d) % (j + 1)
                term = diff[(k, m)] if k < m else diff[(m, k)]
                if k > m:
                    neg = not neg
                dk = term if dk is None else dk * term
            # Approximate reciprocal on the EUP + one Newton step on the VPU
            # (exact EUP divide is multi-pass on the saturated EUP slot).
            r = pl.reciprocal(dk, approx=True)
            r = r * (2.0 - dk * r)
            if neg:
                r = -r
            if need_mask:
                # padded elements would contribute inf/NaN through the matmul
                r = jnp.where(valid, r, 0.0)
            tre = tre + jnp.cos(s[k]) * r
            tim = tim - jnp.sin(s[k]) * r

        # Element reduction on the MXU, accumulated straight into the resident
        # output block (no scratch, no concat copy):
        #   out[0,c,f] += sum_e CD[c,e]*tre[e,f] ; out[1,c,f] += sum_e CD[c,e]*tim[e,f]
        cdt = cdt_ref[...]
        out_ref[0] += jnp.dot(cdt, tre, preferred_element_type=jnp.float32)
        out_ref[1] += jnp.dot(cdt, tim, preferred_element_type=jnp.float32)

    return kernel


# ----------------------------------------------------------------------------
# Glue helpers
# ----------------------------------------------------------------------------
def _fftfreqs(res):
    n_dims = len(res)
    freqs = [jnp.fft.fftfreq(res[d], d=1.0 / res[d]) for d in range(n_dims - 1)]
    freqs.append(jnp.fft.rfftfreq(res[-1], d=1.0 / res[-1]))
    mesh = jnp.meshgrid(*freqs, indexing="ij")
    return jnp.stack(mesh, axis=-1).astype(jnp.float32)       # (..., n_dims)


def ddsl_phys_forward(V, E, D, res, t, j, sig=2.0, mode="density",
                      tile_e=None, tile_f=None):
    """Pallas implementation of DDSL_phys.forward (non-subdim path, j == n_dims)."""
    # TODO(synk): PyTorch casts to float64; TPU Pallas computes in float32.
    V = V.astype(jnp.float32)
    D = D.astype(jnp.float32)
    n_dims = V.shape[1]
    n_elem, n_channel = D.shape
    assert len(res) == n_dims and len(t) == n_dims
    assert mode in ("density", "mass")
    # TODO(synk): subdim path (E.shape[1] == j) and Cayley-Menger content for
    # j < n_dims are not implemented; only the j == n_dims simplex path.
    assert E.shape[1] == j + 1 and j == n_dims

    # frequency grid (flattened) and gaussian spectral filter (unscaled omega)
    omega_raw = _fftfreqs(res)                       # (res0, .., res[-1]//2+1, n_dims)
    spatial = omega_raw.shape[:-1]
    n_freq = int(np.prod(spatial))
    scalevec = jnp.asarray([2.0 * math.pi / tt for tt in t], dtype=jnp.float32)
    omega = (omega_raw * scalevec).reshape(n_freq, n_dims)
    dis = jnp.sqrt(jnp.sum(omega_raw ** 2, axis=-1)).reshape(n_freq)
    filt = jnp.exp(-0.5 * (sig * 2.0 * dis / res[0]) ** 2).astype(jnp.float32)

    # C = factorial(j) * unsigned simplex content  (== |det| for j == n_dims)
    P = V[E]                                         # (n_elem, j+1, n_dims)
    edges = P[:, :-1, :] - P[:, -1:, :]
    C = jnp.abs(jnp.linalg.det(edges))
    CDT = jnp.transpose(C[:, None] * D)              # (n_channel, n_elem)

    # ---- tile plan + TPU-friendly padding -----------------------------------
    ne8 = _round_up(n_elem, 8)
    if tile_e is None:
        tile_e = ne8 if ne8 <= _TE_MAX else _TE_MAX
    nf128 = _round_up(n_freq, 128)
    if tile_f is None:
        # Keep >= 2 frequency tiles whenever nf_pad >= 256 so the "parallel"
        # axis can be sharded across both TensorCores on v7x.  Channels stay
        # padded to 8 only (M=8 matmul is fine; MXU is nowhere near critical).
        tile_f = min(_TF_MAX, 128 * max(1, nf128 // 256))
    ne_pad = _round_up(n_elem, tile_e)
    nf_pad = _round_up(n_freq, tile_f)
    nc_pad = _round_up(n_channel, 8)
    # (8, 128) block-shape rules: CDT's last (lane) dim is tile_e.
    assert tile_e % 8 == 0 and (tile_e % 128 == 0 or tile_e == ne_pad)
    assert tile_f % 128 == 0

    Pk = jnp.transpose(P, (1, 0, 2))                 # (j+1, n_elem, n_dims)
    Pk = jnp.pad(Pk, ((0, 0), (0, ne_pad - n_elem), (0, 0)))
    CDT_p = jnp.pad(CDT, ((0, nc_pad - n_channel), (0, ne_pad - n_elem)))
    omT_p = jnp.pad(jnp.transpose(omega), ((0, 0), (0, nf_pad - n_freq)))

    grid = (nf_pad // tile_f, ne_pad // tile_e)      # (freq "parallel", elem reduction)
    need_mask = ne_pad != n_elem
    kernel = _make_nuft_kernel(j, n_dims, n_elem, tile_e, tile_f, need_mask)

    out = pl.pallas_call(
        kernel,
        out_shape=jax.ShapeDtypeStruct((2, nc_pad, nf_pad), jnp.float32),
        grid_spec=pltpu.PrefetchScalarGridSpec(
            num_scalar_prefetch=0,
            grid=grid,
            in_specs=[
                pl.BlockSpec((j + 1, tile_e, n_dims), lambda f, e: (0, e, 0)),
                pl.BlockSpec((n_dims, tile_f), lambda f, e: (0, f)),
                pl.BlockSpec((nc_pad, tile_e), lambda f, e: (0, e)),
            ],
            out_specs=pl.BlockSpec((2, nc_pad, tile_f), lambda f, e: (0, 0, f)),
        ),
        compiler_params=pltpu.CompilerParams(
            dimension_semantics=("parallel", "arbitrary"),
            vmem_limit_bytes=_VMEM_LIMIT_BYTES,
        ),
    )(Pk, omT_p, CDT_p)

    # ---- cheap spectrum bookkeeping in XLA (moved out of the hot kernel) -----
    fre = out[0, :n_channel, :n_freq]
    fim = out[1, :n_channel, :n_freq]

    # DC bin: -1/j! * sum over ALL elements of C_e * D_ec (global, not per tile)
    dc = (-1.0 / float(factorial(j))) * jnp.sum(CDT, axis=1)   # (n_channel,)
    fre = fre.at[:, 0].set(dc)
    fim = fim.at[:, 0].set(dc)

    # img(F, deg=j): multiply complex spectrum by i**j
    d4 = j % 4
    if d4 == 1:
        fre, fim = -fim, fre
    elif d4 == 2:
        fre, fim = -fre, -fim
    elif d4 == 3:
        fre, fim = fim, -fre

    # density-preserving scaling; non-finite cleanup (superset of the torch
    # F[isnan] = 0: also zeroes infs from exactly-degenerate denominators);
    # gaussian spectral filter.
    scale = float(res[0]) ** j if mode == "density" else 1.0
    fre = fre * scale
    fim = fim * scale
    fre = jnp.where(jnp.isfinite(fre), fre, 0.0) * filt[None, :]
    fim = jnp.where(jnp.isfinite(fim), fim, 0.0) * filt[None, :]

    Fc = (fre + 1j * fim).reshape((n_channel,) + spatial)
    # TODO(synk): torch.irfft has no Pallas equivalent; jnp.fft.irfftn uses the
    # same (backward/1-over-N) normalization.
    f = jnp.fft.irfftn(Fc, s=res, axes=tuple(range(1, 1 + n_dims)))
    return jnp.transpose(f, tuple(range(1, 1 + n_dims)) + (0,))   # (*res, n_channel)


# ----------------------------------------------------------------------------
# Pure-JAX reference (mirrors the PyTorch code path, elementwise reductions)
# ----------------------------------------------------------------------------
def reference_forward(V, E, D, res, t, j, sig=2.0):
    V = V.astype(jnp.float32)
    D = D.astype(jnp.float32)
    omega_raw = _fftfreqs(res)
    omega = omega_raw * jnp.asarray([2.0 * math.pi / tt for tt in t], dtype=jnp.float32)
    P = V[E]
    edges = P[:, :-1, :] - P[:, -1:, :]
    C = jnp.abs(jnp.linalg.det(edges))
    CD = C[:, None] * D                                      # (ne, nc)

    s = jnp.sum(P[:, :, None, None, :] * omega[None, None, :, :, :], axis=-1)  # (ne, j+1, r0, r1h)
    denom = jnp.ones_like(s)
    for dim in range(1, j + 1):
        seqi = [(k + dim) % (j + 1) for k in range(j + 1)]
        denom = denom * (s - s[:, seqi])
    tre = jnp.sum(jnp.cos(s) / denom, axis=1)                # (ne, r0, r1h)
    tim = jnp.sum(-jnp.sin(s) / denom, axis=1)
    Fre = jnp.sum(tre[:, :, :, None] * CD[:, None, None, :], axis=0)   # (r0, r1h, nc)
    Fim = jnp.sum(tim[:, :, :, None] * CD[:, None, None, :], axis=0)
    dc = -1.0 / float(factorial(j)) * jnp.sum(CD, axis=0)
    Fre = Fre.at[0, 0].set(dc)
    Fim = Fim.at[0, 0].set(dc)
    d4 = j % 4
    if d4 == 1:
        Fre, Fim = -Fim, Fre
    elif d4 == 2:
        Fre, Fim = -Fre, -Fim
    elif d4 == 3:
        Fre, Fim = Fim, -Fre
    scl = float(res[0]) ** j
    Fre, Fim = Fre * scl, Fim * scl
    Fre = jnp.where(jnp.isnan(Fre), 0.0, Fre)
    Fim = jnp.where(jnp.isnan(Fim), 0.0, Fim)
    dis = jnp.sqrt(jnp.sum(omega_raw ** 2, axis=-1))
    filt = jnp.exp(-0.5 * (sig * 2.0 * dis / res[0]) ** 2)[..., None]
    Fre, Fim = Fre * filt, Fim * filt
    Fc = jnp.transpose(Fre + 1j * Fim, (2, 0, 1))
    f = jnp.fft.irfftn(Fc, s=res, axes=(1, 2))
    return jnp.transpose(f, (1, 2, 0))


# ----------------------------------------------------------------------------
if __name__ == "__main__":
    n_channel = 4
    res = (16, 16)
    t = (1.0, 1.0)
    j = 2

    def make_mesh(gs, key):
        # perturbed gs x gs vertex grid triangulated into 2*(gs-1)^2 triangles
        k1, k2 = jax.random.split(key)
        xs = np.linspace(0.15, 0.85, gs)
        vgrid = np.stack(np.meshgrid(xs, xs, indexing="ij"), axis=-1).reshape(-1, 2)
        jitter = 0.2 * (xs[1] - xs[0])
        V = jnp.asarray(vgrid, dtype=jnp.float32) + jax.random.uniform(
            k1, (gs * gs, 2), minval=-jitter, maxval=jitter, dtype=jnp.float32)
        tris = []
        for a in range(gs - 1):
            for b in range(gs - 1):
                v00 = a * gs + b
                v01 = a * gs + b + 1
                v10 = (a + 1) * gs + b
                v11 = (a + 1) * gs + b + 1
                tris.append([v00, v01, v10])
                tris.append([v01, v11, v10])
        E = jnp.asarray(np.array(tris, dtype=np.int32))
        D = jax.random.uniform(k2, (E.shape[0], n_channel), minval=0.5,
                               maxval=1.5, dtype=jnp.float32)
        return V, E, D

    key = jax.random.PRNGKey(0)
    k_small, k_big = jax.random.split(key)

    # case 1: tiny mesh (8 triangles), default tile plan -> 2 freq tiles,
    #         single element tile (no validity mask path)
    V1, E1, D1 = make_mesh(3, k_small)
    f1 = jax.block_until_ready(ddsl_phys_forward(V1, E1, D1, res, t, j, sig=2.0))
    assert f1.shape == res + (n_channel,), f1.shape
    assert np.isfinite(np.asarray(f1)).all()
    f1_ref = np.asarray(reference_forward(V1, E1, D1, res, t, j, 2.0))
    tol1 = 0.05 * float(np.max(np.abs(f1_ref))) + 1e-4
    np.testing.assert_allclose(np.asarray(f1), f1_ref, rtol=0.05, atol=tol1)

    # case 2: larger mesh (162 triangles), forced small tiles -> 2x2 grid
    #         exercising the in-output element accumulator, the padded-element
    #         mask, and frequency tiling.
    V2, E2, D2 = make_mesh(10, k_big)
    f2 = jax.block_until_ready(
        ddsl_phys_forward(V2, E2, D2, res, t, j, sig=2.0, tile_e=128, tile_f=128))
    assert f2.shape == res + (n_channel,), f2.shape
    assert np.isfinite(np.asarray(f2)).all()
    f2_ref = np.asarray(reference_forward(V2, E2, D2, res, t, j, 2.0))
    tol2 = 0.05 * float(np.max(np.abs(f2_ref))) + 1e-4
    np.testing.assert_allclose(np.asarray(f2), f2_ref, rtol=0.05, atol=tol2)

    print("KERNEL_OK")
</pallas_src>

<mosaic_0001>
module attributes {stable_mosaic.version = 11 : i64} {
  func.func @kernel(%arg0: i32, %arg1: i32, %arg2: memref<3x8x2xf32, #tpu.memory_space<vmem>>, %arg3: memref<2x128xf32, #tpu.memory_space<vmem>>, %arg4: memref<8x8xf32, #tpu.memory_space<vmem>>, %arg5: memref<2x8x128xf32, #tpu.memory_space<vmem>>) attributes {dimension_semantics = [#tpu.dimension_semantics<parallel>, #tpu.dimension_semantics<arbitrary>], iteration_bounds = array<i64: 2, 1>, scalar_prefetch = 0 : i64, scratch_operands = 0 : i64, tpu.core_type = #tpu.core_type<tc>, window_params = [{transform_indices = @transform_0, window_bounds = array<i64: 3, 8, 2>}, {transform_indices = @transform_1, window_bounds = array<i64: 2, 128>}, {transform_indices = @transform_2, window_bounds = array<i64: 8, 8>}, {transform_indices = @transform_3, window_bounds = array<i64: 2, 8, 128>}]} {
    %c0_i32 = arith.constant 0 : i32
    %0 = arith.cmpi eq, %arg1, %c0_i32 : i32
    %1 = arith.extui %0 : i1 to i32
    %c0_i32_0 = arith.constant 0 : i32
    %2 = arith.cmpi ne, %1, %c0_i32_0 : i32
    scf.if %2 {
      %cst_30 = arith.constant 0.000000e+00 : f32
      %101 = vector.broadcast %cst_30 : f32 to vector<2x8x128xf32>
      %c0_31 = arith.constant 0 : index
      %c0_32 = arith.constant 0 : index
      %c0_33 = arith.constant 0 : index
      %102 = vector.load %arg5[%c0_31, %c0_32, %c0_33] : memref<2x8x128xf32, #tpu.memory_space<vmem>>, vector<2x8x128xf32>
      tpu.vector_store %arg5[%c0_31, %c0_32, %c0_33], %101 {strides = array<i32>} : memref<2x8x128xf32, #tpu.memory_space<vmem>>, vector<2x8x128xf32>,
    } else {
    }
    %c0 = arith.constant 0 : index
    %c0_1 = arith.constant 0 : index
    %3 = vector.load %arg3[%c0, %c0_1] : memref<2x128xf32, #tpu.memory_space<vmem>>, vector<2x128xf32>
    %c0_2 = arith.constant 0 : index
    %c0_3 = arith.constant 0 : index
    %c0_4 = arith.constant 0 : index
    %4 = vector.load %arg2[%c0_2, %c0_3, %c0_4] : memref<3x8x2xf32, #tpu.memory_space<vmem>>, vector<1x8x2xf32>
    %5 = vector.shape_cast %4 : vector<1x8x2xf32> to vector<8x2xf32>
    %6 = vector.extract_strided_slice %5 {offsets = [0, 0], sizes = [8, 1], strides = [1, 1]} : vector<8x2xf32> to vector<8x1xf32>
    %7 = vector.extract_strided_slice %3 {offsets = [0, 0], sizes = [1, 128], strides = [1, 1]} : vector<2x128xf32> to vector<1x128xf32>
    %8 = vector.broadcast %6 : vector<8x1xf32> to vector<8x128xf32>
    %9 = vector.broadcast %7 : vector<1x128xf32> to vector<8x128xf32>
    %10 = arith.mulf %8, %9 : vector<8x128xf32>
    %11 = vector.extract_strided_slice %5 {offsets = [0, 1], sizes = [8, 1], strides = [1, 1]} : vector<8x2xf32> to vector<8x1xf32>
    %12 = vector.extract_strided_slice %3 {offsets = [1, 0], sizes = [1, 128], strides = [1, 1]} : vector<2x128xf32> to vector<1x128xf32>
    %13 = vector.broadcast %11 : vector<8x1xf32> to vector<8x128xf32>
    %14 = vector.broadcast %12 : vector<1x128xf32> to vector<8x128xf32>
    %15 = arith.mulf %13, %14 : vector<8x128xf32>
    %16 = arith.addf %10, %15 : vector<8x128xf32>
    %c1 = arith.constant 1 : index
    %c0_5 = arith.constant 0 : index
    %c0_6 = arith.constant 0 : index
    %17 = vector.load %arg2[%c1, %c0_5, %c0_6] : memref<3x8x2xf32, #tpu.memory_space<vmem>>, vector<1x8x2xf32>
    %18 = vector.shape_cast %17 : vector<1x8x2xf32> to vector<8x2xf32>
    %19 = vector.extract_strided_slice %18 {offsets = [0, 0], sizes = [8, 1], strides = [1, 1]} : vector<8x2xf32> to vector<8x1xf32>
    %20 = vector.extract_strided_slice %3 {offsets = [0, 0], sizes = [1, 128], strides = [1, 1]} : vector<2x128xf32> to vector<1x128xf32>
    %21 = vector.broadcast %19 : vector<8x1xf32> to vector<8x128xf32>
    %22 = vector.broadcast %20 : vector<1x128xf32> to vector<8x128xf32>
    %23 = arith.mulf %21, %22 : vector<8x128xf32>
    %24 = vector.extract_strided_slice %18 {offsets = [0, 1], sizes = [8, 1], strides = [1, 1]} : vector<8x2xf32> to vector<8x1xf32>
    %25 = vector.extract_strided_slice %3 {offsets = [1, 0], sizes = [1, 128], strides = [1, 1]} : vector<2x128xf32> to vector<1x128xf32>
    %26 = vector.broadcast %24 : vector<8x1xf32> to vector<8x128xf32>
    %27 = vector.broadcast %25 : vector<1x128xf32> to vector<8x128xf32>
    %28 = arith.mulf %26, %27 : vector<8x128xf32>
    %29 = arith.addf %23, %28 : vector<8x128xf32>
    %c2 = arith.constant 2 : index
    %c0_7 = arith.constant 0 : index
    %c0_8 = arith.constant 0 : index
    %30 = vector.load %arg2[%c2, %c0_7, %c0_8] : memref<3x8x2xf32, #tpu.memory_space<vmem>>, vector<1x8x2xf32>
    %31 = vector.shape_cast %30 : vector<1x8x2xf32> to vector<8x2xf32>
    %32 = vector.extract_strided_slice %31 {offsets = [0, 0], sizes = [8, 1], strides = [1, 1]} : vector<8x2xf32> to vector<8x1xf32>
    %33 = vector.extract_strided_slice %3 {offsets = [0, 0], sizes = [1, 128], strides = [1, 1]} : vector<2x128xf32> to vector<1x128xf32>
    %34 = vector.broadcast %32 : vector<8x1xf32> to vector<8x128xf32>
    %35 = vector.broadcast %33 : vector<1x128xf32> to vector<8x128xf32>
    %36 = arith.mulf %34, %35 : vector<8x128xf32>
    %37 = vector.extract_strided_slice %31 {offsets = [0, 1], sizes = [8, 1], strides = [1, 1]} : vector<8x2xf32> to vector<8x1xf32>
    %38 = vector.extract_strided_slice %3 {offsets = [1, 0], sizes = [1, 128], strides = [1, 1]} : vector<2x128xf32> to vector<1x128xf32>
    %39 = vector.broadcast %37 : vector<8x1xf32> to vector<8x128xf32>
    %40 = vector.broadcast %38 : vector<1x128xf32> to vector<8x128xf32>
    %41 = arith.mulf %39, %40 : vector<8x128xf32>
    %42 = arith.addf %36, %41 : vector<8x128xf32>
    %43 = arith.subf %16, %29 : vector<8x128xf32>
    %44 = arith.subf %16, %42 : vector<8x128xf32>
    %45 = arith.subf %29, %42 : vector<8x128xf32>
    %cst = arith.constant 0.000000e+00 : f32
    %46 = vector.broadcast %cst : f32 to vector<8x128xf32>
    %cst_9 = arith.constant 0.000000e+00 : f32
    %47 = vector.broadcast %cst_9 : f32 to vector<8x128xf32>
    %48 = arith.mulf %43, %44 : vector<8x128xf32>
    %49 = tpu.reciprocal %48 {approx = true} : vector<8x128xf32> -> vector<8x128xf32>
    %50 = arith.mulf %48, %49 : vector<8x128xf32>
    %cst_10 = arith.constant 2.000000e+00 : f32
    %51 = vector.broadcast %cst_10 : f32 to vector<8x128xf32>
    %52 = arith.subf %51, %50 : vector<8x128xf32>
    %53 = arith.mulf %49, %52 : vector<8x128xf32>
    %54 = math.cos %16 : vector<8x128xf32>
    %55 = arith.mulf %54, %53 : vector<8x128xf32>
    %56 = arith.addf %46, %55 : vector<8x128xf32>
    %57 = math.sin %16 : vector<8x128xf32>
    %58 = arith.mulf %57, %53 : vector<8x128xf32>
    %59 = arith.subf %47, %58 : vector<8x128xf32>
    %60 = arith.mulf %45, %43 : vector<8x128xf32>
    %61 = tpu.reciprocal %60 {approx = true} : vector<8x128xf32> -> vector<8x128xf32>
    %62 = arith.mulf %60, %61 : vector<8x128xf32>
    %cst_11 = arith.constant 2.000000e+00 : f32
    %63 = vector.broadcast %cst_11 : f32 to vector<8x128xf32>
    %64 = arith.subf %63, %62 : vector<8x128xf32>
    %65 = arith.mulf %61, %64 : vector<8x128xf32>
    %cst_12 = arith.constant 0.000000e+00 : f32
    %66 = vector.broadcast %cst_12 : f32 to vector<8x128xf32>
    %67 = arith.subf %66, %65 : vector<8x128xf32>
    %68 = math.cos %29 : vector<8x128xf32>
    %69 = arith.mulf %68, %67 : vector<8x128xf32>
    %70 = arith.addf %56, %69 : vector<8x128xf32>
    %71 = math.sin %29 : vector<8x128xf32>
    %72 = arith.mulf %71, %67 : vector<8x128xf32>
    %73 = arith.subf %59, %72 : vector<8x128xf32>
    %74 = arith.mulf %44, %45 : vector<8x128xf32>
    %75 = tpu.reciprocal %74 {approx = true} : vector<8x128xf32> -> vector<8x128xf32>
    %76 = arith.mulf %74, %75 : vector<8x128xf32>
    %cst_13 = arith.constant 2.000000e+00 : f32
    %77 = vector.broadcast %cst_13 : f32 to vector<8x128xf32>
    %78 = arith.subf %77, %76 : vector<8x128xf32>
    %79 = arith.mulf %75, %78 : vector<8x128xf32>
    %80 = math.cos %42 : vector<8x128xf32>
    %81 = arith.mulf %80, %79 : vector<8x128xf32>
    %82 = arith.addf %70, %81 : vector<8x128xf32>
    %83 = math.sin %42 : vector<8x128xf32>
    %84 = arith.mulf %83, %79 : vector<8x128xf32>
    %85 = arith.subf %73, %84 : vector<8x128xf32>
    %c0_14 = arith.constant 0 : index
    %c0_15 = arith.constant 0 : index
    %86 = vector.load %arg4[%c0_14, %c0_15] : memref<8x8xf32, #tpu.memory_space<vmem>>, vector<8x8xf32>
    %c0_16 = arith.constant 0 : index
    %c0_17 = arith.constant 0 : index
    %c0_18 = arith.constant 0 : index
    %87 = vector.load %arg5[%c0_16, %c0_17, %c0_18] : memref<2x8x128xf32, #tpu.memory_space<vmem>>, vector<1x8x128xf32>
    %88 = vector.shape_cast %87 : vector<1x8x128xf32> to vector<8x128xf32>
    %cst_19 = arith.constant dense<0.000000e+00> : vector<8x128xf32>
    %89 = tpu.matmul %86, %82, %cst_19 {dimension_numbers = #tpu.dot_dimension_numbers<[1], [0], [0], [1], [0, 0, 1, 1], [], []>} : vector<8x8xf32>, vector<8x128xf32>, vector<8x128xf32> -> vector<8x128xf32>
    %90 = arith.addf %88, %89 : vector<8x128xf32>
    %c0_20 = arith.constant 0 : index
    %c0_21 = arith.constant 0 : index
    %c0_22 = arith.constant 0 : index
    %91 = vector.load %arg5[%c0_20, %c0_21, %c0_22] : memref<2x8x128xf32, #tpu.memory_space<vmem>>, vector<1x8x128xf32>
    %92 = vector.shape_cast %91 : vector<1x8x128xf32> to vector<8x128xf32>
    %93 = vector.shape_cast %90 : vector<8x128xf32> to vector<1x8x128xf32>
    tpu.vector_store %arg5[%c0_20, %c0_21, %c0_22], %93 {strides = array<i32>} : memref<2x8x128xf32, #tpu.memory_space<vmem>>, vector<1x8x128xf32>,
    %c1_23 = arith.constant 1 : index
    %c0_24 = arith.constant 0 : index
    %c0_25 = arith.constant 0 : index
    %94 = vector.load %arg5[%c1_23, %c0_24, %c0_25] : memref<2x8x128xf32, #tpu.memory_space<vmem>>, vector<1x8x128xf32>
    %95 = vector.shape_cast %94 : vector<1x8x128xf32> to vector<8x128xf32>
    %cst_26 = arith.constant dense<0.000000e+00> : vector<8x128xf32>
    %96 = tpu.matmul %86, %85, %cst_26 {dimension_numbers = #tpu.dot_dimension_numbers<[1], [0], [0], [1], [0, 0, 1, 1], [], []>} : vector<8x8xf32>, vector<8x128xf32>, vector<8x128xf32> -> vector<8x128xf32>
    %97 = arith.addf %95, %96 : vector<8x128xf32>
    %c1_27 = arith.constant 1 : index
    %c0_28 = arith.constant 0 : index
    %c0_29 = arith.constant 0 : index
    %98 = vector.load %arg5[%c1_27, %c0_28, %c0_29] : memref<2x8x128xf32, #tpu.memory_space<vmem>>, vector<1x8x128xf32>
    %99 = vector.shape_cast %98 : vector<1x8x128xf32> to vector<8x128xf32>
    %100 = vector.shape_cast %97 : vector<8x128xf32> to vector<1x8x128xf32>
    tpu.vector_store %arg5[%c1_27, %c0_28, %c0_29], %100 {strides = array<i32>} : memref<2x8x128xf32, #tpu.memory_space<vmem>>, vector<1x8x128xf32>,
    return
  }
  func.func @transform_0(%arg0: i32, %arg1: i32) -> (i32, i32, i32) {
    %c0_i32 = arith.constant 0 : i32
    %c0_i32_0 = arith.constant 0 : i32
    %c0_i32_1 = arith.constant 0 : i32
    return %c0_i32, %arg1, %c0_i32_0 : i32, i32, i32
  }
  func.func @transform_1(%arg0: i32, %arg1: i32) -> (i32, i32) {
    %c0_i32 = arith.constant 0 : i32
    %c0_i32_0 = arith.constant 0 : i32
    return %c0_i32, %arg0 : i32, i32
  }
  func.func @transform_2(%arg0: i32, %arg1: i32) -> (i32, i32) {
    %c0_i32 = arith.constant 0 : i32
    %c0_i32_0 = arith.constant 0 : i32
    return %c0_i32, %arg1 : i32, i32
  }
  func.func @transform_3(%arg0: i32, %arg1: i32) -> (i32, i32, i32) {
    %c0_i32 = arith.constant 0 : i32
    %c0_i32_0 = arith.constant 0 : i32
    %c0_i32_1 = arith.constant 0 : i32
    return %c0_i32, %c0_i32_0, %arg0 : i32, i32, i32
  }
}

</mosaic_0001>

<llo_original>
// kernel: tpu_custom_call.1
$region0: #{tpu_custom_call.1}
  #allocation0 [shape = 'u32[]', space=smem, size = 0x4, offset = 0x4, fixed_abs, tag = 'smem constant byte address 0x4 - core index']
  #allocation1 [shape = 'u32[144,128]{1,0:T(1,128)}', space=vmem, size = 0x12000, scoped, tag = 'internal scratch']
  %s0 = inlined_call_operand.vmem [shape: f32[3,8,2], index: 0, kind: input, shape index: {}]
  %s1 = inlined_call_operand.vmem [shape: f32[2,256], index: 1, kind: input, shape index: {}]
  %s2 = inlined_call_operand.vmem [shape: f32[8,8], index: 2, kind: input, shape index: {}]
  %s3 = inlined_call_operand.hbm [shape: f32[2,8,256], index: 3, kind: output, shape index: {}]
  %s4 = sld [smem:[#allocation0]]
  $region49: #{tpu_custom_call.1} parent=0
    _
  %s6 = ssub.s32 1, %s4
  %s7 = scalar_select 0, %s6, %s4
  $region1: #{tpu_custom_call.1} parent=0
    #allocation2 [shape = 'u8[16384]{0}', space=vmem, size = 0x4000, scoped, tag = 'output window, operand 0']
    #allocation3 [shape = 's32[2]{0}', space=sflag, size = 0x8, scoped, tag = 'scoped memory for tpu_custom_call.1']
    %8 = vsyncpa [#allocation3], 0
    %s9 = scalar_lea.sflag [#allocation3], 1
    %10 = vsyncpa %s9, 0
    loop: start=0, step=1, limit=4
    $region2: #{tpu_custom_call.1} parent=1 // loop_pre_header
      _
    $region3: #{tpu_custom_call.1} parent=1 // loop_header
      %s12 = sphi 0, %s16
      %p13 = scmp.ge.s32.totalorder %s12, 4
      %s19 = sphi 0, %s31
      %s20 = sphi 0, %s27
      %s21 = sphi 0, %s19
      %s22 = sphi 0, %s20
      %s23 = sphi 0, %s21
      %s24 = sphi 0, %s22
      %s34 = sphi 0, %s36
      %s37 = sphi 0, %s34
      %s38 = sphi 0, %s37
      %s54 = sphi 0, %s38
      %s60 = sphi 0, %s62
      %s63 = sphi 0, %s60
      %s64 = sphi 0, %s63
      %s80 = sphi 0, %s64
      %s86 = sphi 0, %s88
      %s89 = sphi 0, %s86
      %s90 = sphi 0, %s89
      %s106 = sphi 0, %s90
      %s112 = sphi 0, %s114
      %s115 = sphi 0, %s112
      %s116 = sphi 0, %s115
      %s132 = sphi 0, %s116
    $region4: #{tpu_custom_call.1} parent=1 // loop_header_branch
      %15 = sbr.rel (%p13) target = $region8
    $region5: #{tpu_custom_call.1} parent=1 // loop_body
      %s17 = ssub.s32 %s12, 1
      %s18 = ssub.s32 %s12, 2
      %s25 = sadd.s32 1, %s20
      %p26 = scmp.ge.s32.totalorder %s25, 1
      %s27 = scalar_select %p26, 0, %s25
      %s28 = sadd.s32 1, %s19
      %s29 = scalar_select %p26, %s28, %s19
      %p30 = scmp.ge.s32.totalorder %s29, 2
      %s31 = scalar_select %p30, 0, %s29
      %s32 = ssub.s32 %s20, %s27
      %p33 = scmp.eq.s32.totalorder %s32, 0
      %s35 = sadd.s32 %s34, 1
      %s36 = scalar_select %p33, %s34, %s35
      %p39 = pneg %p33
      %p40 = scmp.eq.s32.totalorder %s12, 1
      %p41 = por %p39, %p40
      %p42 = scmp.ne.s32.totalorder %s34, %s37
      %p43 = scmp.eq.s32.totalorder %s12, 0
      %p44 = por %p42, %p43
      %p45 = scmp.ne.s32.totalorder %s34, %s37
      %p46 = scmp.eq.s32.totalorder %s17, 1
      %p47 = por %p45, %p46
      %p48 = scmp.ne.s32.totalorder %s37, %s38
      %p49 = scmp.eq.s32.totalorder %s17, 0
      %p50 = por %p48, %p49
      %p51 = scmp.ne.s32.totalorder %s37, %s38
      %p52 = scmp.eq.s32.totalorder %s18, 1
      %p53 = por %p51, %p52
      %p55 = scmp.ne.s32.totalorder %s38, %s54
      %p56 = scmp.eq.s32.totalorder %s18, 0
      %p57 = por %p55, %p56
      %s58 = ssub.s32 %s19, %s31
      %p59 = scmp.eq.s32.totalorder %s58, 0
      %s61 = sadd.s32 %s60, 1
      %s62 = scalar_select %p59, %s60, %s61
      %p65 = pneg %p59
      %p66 = scmp.eq.s32.totalorder %s12, 1
      %p67 = por %p65, %p66
      %p68 = scmp.ne.s32.totalorder %s60, %s63
      %p69 = scmp.eq.s32.totalorder %s12, 0
      %p70 = por %p68, %p69
      %p71 = scmp.ne.s32.totalorder %s60, %s63
      %p72 = scmp.eq.s32.totalorder %s17, 1
      %p73 = por %p71, %p72
      %p74 = scmp.ne.s32.totalorder %s63, %s64
      %p75 = scmp.eq.s32.totalorder %s17, 0
      %p76 = por %p74, %p75
      %p77 = scmp.ne.s32.totalorder %s63, %s64
      %p78 = scmp.eq.s32.totalorder %s18, 1
      %p79 = por %p77, %p78
      %p81 = scmp.ne.s32.totalorder %s64, %s80
      %p82 = scmp.eq.s32.totalorder %s18, 0
      %p83 = por %p81, %p82
      %s84 = ssub.s32 %s20, %s27
      %p85 = scmp.eq.s32.totalorder %s84, 0
      %s87 = sadd.s32 %s86, 1
      %s88 = scalar_select %p85, %s86, %s87
      %p91 = pneg %p85
      %p92 = scmp.eq.s32.totalorder %s12, 1
      %p93 = por %p91, %p92
      %p94 = scmp.ne.s32.totalorder %s86, %s89
      %p95 = scmp.eq.s32.totalorder %s12, 0
      %p96 = por %p94, %p95
      %p97 = scmp.ne.s32.totalorder %s86, %s89
      %p98 = scmp.eq.s32.totalorder %s17, 1
      %p99 = por %p97, %p98
      %p100 = scmp.ne.s32.totalorder %s89, %s90
      %p101 = scmp.eq.s32.totalorder %s17, 0
      %p102 = por %p100, %p101
      %p103 = scmp.ne.s32.totalorder %s89, %s90
      %p104 = scmp.eq.s32.totalorder %s18, 1
      %p105 = por %p103, %p104
      %p107 = scmp.ne.s32.totalorder %s90, %s106
      %p108 = scmp.eq.s32.totalorder %s18, 0
      %p109 = por %p107, %p108
      %s110 = ssub.s32 %s19, %s31
      %p111 = scmp.eq.s32.totalorder %s110, 0
      %s113 = sadd.s32 %s112, 1
      %s114 = scalar_select %p111, %s112, %s113
      %p117 = pneg %p111
      %p118 = scmp.eq.s32.totalorder %s12, 1
      %p119 = por %p117, %p118
      %p120 = scmp.ne.s32.totalorder %s112, %s115
      %p121 = scmp.eq.s32.totalorder %s12, 0
      %p122 = por %p120, %p121
      %p123 = scmp.ne.s32.totalorder %s112, %s115
      %p124 = scmp.eq.s32.totalorder %s17, 1
      %p125 = por %p123, %p124
      %p126 = scmp.ne.s32.totalorder %s115, %s116
      %p127 = scmp.eq.s32.totalorder %s17, 0
      %p128 = por %p126, %p127
      %p129 = scmp.ne.s32.totalorder %s115, %s116
      %p130 = scmp.eq.s32.totalorder %s18, 1
      %p131 = por %p129, %p130
      %p133 = scmp.ne.s32.totalorder %s116, %s132
      %p134 = scmp.eq.s32.totalorder %s18, 0
      %p135 = por %p133, %p134
      %p136 = scmp.le.s32.totalorder 1, %s12
      %p137 = scmp.lt.s32.totalorder %s12, 3
      %p138 = pnand %p136, %p137
      %p139 = pneg %p138
      // Predicated region
      $region9: #{tpu_custom_call.1} parent=5 // pred_check
        _
      $region10: #{tpu_custom_call.1} parent=5 // pred_check_branch
        %141 = sbr.rel (%p138) target = $region12
      $region11: #{tpu_custom_call.1} parent=5 // pred_region
        %s142 = ssub.s32 %s12, 1
        // Predicated region
        $region13: #{tpu_custom_call.1} parent=11 // pred_check
          %p143 = pneg %p50
        $region14: #{tpu_custom_call.1} parent=11 // pred_check_branch
          %145 = sbr.rel (%p143) target = $region16
        $region15: #{tpu_custom_call.1} parent=11 // pred_region
          %p146 = scmp.lt.s32.totalorder %s22, 0
          %s147 = scalar_select %p146, %s22, 0
          %s148 = smul.addr %s147, 8
          %s149 = scalar_lea.vmem %s0, %s148
        $region16: #{tpu_custom_call.1} parent=11 // pred_fallthru
          _
        // Predicated region
        $region17: #{tpu_custom_call.1} parent=11 // pred_check
          %p150 = pneg %p102
        $region18: #{tpu_custom_call.1} parent=11 // pred_check_branch
          %152 = sbr.rel (%p150) target = $region20
        $region19: #{tpu_custom_call.1} parent=11 // pred_region
          %p153 = scmp.lt.s32.totalorder %s22, 0
          %s154 = scalar_select %p153, %s22, 0
          %s155 = smul.addr %s154, 8
          %s156 = scalar_lea.vmem %s2, %s155
        $region20: #{tpu_custom_call.1} parent=11 // pred_fallthru
          _
      $region12: #{tpu_custom_call.1} parent=5 // pred_fallthru
        _
      %p157 = scmp.lt.s32.totalorder %s12, 2
      // Predicated region
      $region21: #{tpu_custom_call.1} parent=5 // pred_check
        %p158 = pneg %p157
      $region22: #{tpu_custom_call.1} parent=5 // pred_check_branch
        %160 = sbr.rel (%p158) target = $region24
      $region23: #{tpu_custom_call.1} parent=5 // pred_region
        // Predicated region
        $region25: #{tpu_custom_call.1} parent=23 // pred_check
          %p161 = pneg %p70
        $region26: #{tpu_custom_call.1} parent=23 // pred_check_branch
          %163 = sbr.rel (%p161) target = $region28
        $region27: #{tpu_custom_call.1} parent=23 // pred_region
          %p164 = scmp.lt.s32.totalorder %s19, 1
          %s165 = scalar_select %p164, %s19, 1
          %s166 = smul.addr %s165, 2
          %s167 = scalar_lea.vmem %s1, %s166
        $region28: #{tpu_custom_call.1} parent=23 // pred_fallthru
          _
      $region24: #{tpu_custom_call.1} parent=5 // pred_fallthru
        _
      %p168 = scmp.le.s32.totalorder 1, %s12
      %p169 = scmp.lt.s32.totalorder %s12, 3
      %p170 = pnand %p168, %p169
      %p171 = pneg %p170
      // Predicated region
      $region29: #{tpu_custom_call.1} parent=5 // pred_check
        _
      $region30: #{tpu_custom_call.1} parent=5 // pred_check_branch
        %173 = sbr.rel (%p170) target = $region32
      $region31: #{tpu_custom_call.1} parent=5 // pred_region
        %s174 = ssub.s32 %s12, 1
        %p175 = scmp.lt.s32.totalorder %s22, 0
        %s176 = scalar_select %p175, %s22, 0
        %s177 = smul.addr %s176, 8
        %s178 = scalar_lea.vmem %s0, %s177
        %p179 = pneg %p50
        %p180 = pneg %p47
        %p181 = scmp.lt.s32.totalorder %s21, 1
        %s182 = scalar_select %p181, %s21, 1
        %s183 = smul.addr %s182, 2
        %s184 = scalar_lea.vmem %s1, %s183
        %p185 = pneg %p76
        %p186 = pneg %p73
        %p187 = scmp.lt.s32.totalorder %s22, 0
        %s188 = scalar_select %p187, %s22, 0
        %s189 = smul.addr %s188, 8
        %s190 = scalar_lea.vmem %s2, %s189
        %p191 = pneg %p102
        %p192 = pneg %p99
        %p193 = pneg %p128
        %p194 = pneg %p125
        %s195 = sand.u32 %s115, 1
        %s196 = scalar_lea.sflag [#allocation3], %s195
        %s197 = sand.u32 %s115, 1
        %s198 = smul.addr %s197, 16
        %s199 = scalar_lea.vmem [#allocation2], %s198
        %p200 = scmp.lt.s32.totalorder %s22, 0
        %s201 = scalar_select %p200, %s22, 0
        %s202 = smul.addr %s201, 8
        %s203 = scalar_lea.vmem %s0, %s202
        %p204 = scmp.lt.s32.totalorder %s21, 1
        %s205 = scalar_select %p204, %s21, 1
        %s206 = smul.addr %s205, 2
        %s207 = scalar_lea.vmem %s1, %s206
        %p208 = scmp.lt.s32.totalorder %s22, 0
        %s209 = scalar_select %p208, %s22, 0
        %s210 = smul.addr %s209, 8
        %s211 = scalar_lea.vmem %s2, %s210
        %p212 = scmp.eq.s32.totalorder %s22, 0
        // Predicated region
        $region33: #{tpu_custom_call.1} parent=31 // pred_check
          %p213 = pneg %p212
        $region34: #{tpu_custom_call.1} parent=31 // pred_check_branch
          %215 = sbr.rel (%p213) target = $region36
        $region35: #{tpu_custom_call.1} parent=31 // pred_region
          %216 = vst [vmem:[%s199] sm:$0xff] 0.0
          %217 = vst [vmem:[%s199 + $0x8] sm:$0xff] 0.0
        $region36: #{tpu_custom_call.1} parent=31 // pred_fallthru
          _
        %v218 = vld [vmem:[%s207] sm:$0x3]
        %v219 = vld [vmem:[%s203] sm:$0xff]
        %221 = vset.pattern.permute.xlu0 0
        %222 = vperm.xlu0 %221, %v219
        %v223 = vpop.permute.xlu0 %222
        %v225 = vlaneseq
        %v226 = vshrl.u32 %v225, 7
        %v227 = vsub.s32 0, %v226
        %v228 = vrot.slane %v218, %v227
        %v229 = vmul.f32 %v223, %v228
        %230 = vset.pattern.permute.xlu0 1
        %231 = vperm.xlu0 %230, %v219
        %v232 = vpop.permute.xlu0 %231
        %v234 = vlaneseq
        %v235 = vshrl.u32 %v234, 7
        %v236 = vsub.s32 1, %v235
        %v237 = vrot.slane %v218, %v236
        %v238 = vmul.f32 %v232, %v237
        %v239 = vadd.f32 %v229, %v238
        %s240 = scalar_lea.vmem %s203, 8
        %v241 = vld [vmem:[%s240] sm:$0xff]
        %243 = vset.pattern.permute.xlu0 0
        %244 = vperm.xlu0 %243, %v241
        %v245 = vpop.permute.xlu0 %244
        %v247 = vmul.f32 %v245, %v228
        %248 = vset.pattern.permute.xlu0 1
        %249 = vperm.xlu0 %248, %v241
        %v250 = vpop.permute.xlu0 %249
        %v252 = vmul.f32 %v250, %v237
        %v253 = vadd.f32 %v247, %v252
        %s254 = scalar_lea.vmem %s203, 16
        %v255 = vld [vmem:[%s254] sm:$0xff]
        %257 = vset.pattern.permute.xlu0 0
        %258 = vperm.xlu0 %257, %v255
        %v259 = vpop.permute.xlu0 %258
        %v261 = vmul.f32 %v259, %v228
        %262 = vset.pattern.permute.xlu0 1
        %263 = vperm.xlu0 %262, %v255
        %v264 = vpop.permute.xlu0 %263
        %v266 = vmul.f32 %v264, %v237
        %v267 = vadd.f32 %v261, %v266
        %v268 = vsub.f32 %v239, %v253
        %v269 = vsub.f32 %v239, %v267
        %v270 = vsub.f32 %v253, %v267
        %v271 = vmul.f32 %v268, %v269
        %v272 = vrcp.pop %v271
        %v273 = vmul.f32 %v271, %v272
        %v274 = vsub.f32 2.0, %v273
        %v275 = vmul.f32 %v272, %v274
        %v276 = vand.u32 2147483647, %v239
        %vm277 = vcmp.le.f32.partialorder %v276, 0.7853982
        %vm278 = vcmp.lt.s32.totalorder %v239, 0
        %v279 = vand.u32 %v239, 2139095040
        %v280 = vshrl.u32 %v279, 23
        %v281 = vsub.s32 %v280, 127
        %v282 = vand.u32 2147483647, %v239
        %v283 = vand.u32 %v282, 8388607
        %v284 = vor.u32 %v283, 8388608
        %v285 = vsub.s32 0, %v284
        %v286 = vadd.s32 %v281, 1
        %vm287 = vcmp.gt.s32.totalorder %v286, 0
        %v288 = vsel %vm287, %v286, 0
        %v289 = vshrl.u32 %v288, 5
        %v290 = vand.u32 %v288, 31
        %v291 = vsub.s32 32, %v290
        %v292 = vshrl.u32 683565275, %v291
        %v293 = vshll.u32 683565275, %v290
        %v294 = vshrl.u32 2475754826, %v291
        %v295 = vor.u32 %v293, %v294
        %v296 = vshll.u32 2475754826, %v290
        %v297 = vshrl.u32 2131351028, %v291
        %v298 = vor.u32 %v296, %v297
        %v299 = vshll.u32 2131351028, %v290
        %v300 = vshrl.u32 2102212464, %v291
        %v301 = vor.u32 %v299, %v300
        %v302 = vshll.u32 2102212464, %v290
        %v303 = vshrl.u32 920167782, %v291
        %v304 = vor.u32 %v302, %v303
        %v305 = vshll.u32 920167782, %v290
        %v306 = vshrl.u32 1326507024, %v291
        %v307 = vor.u32 %v305, %v306
        %vm308 = vcmp.lt.s32.totalorder %v289, 1
        %vm309 = vcmp.lt.s32.totalorder %v289, 2
        %vm310 = vcmp.lt.s32.totalorder %v289, 3
        %vm311 = vcmp.lt.s32.totalorder %v289, 4
        %v312 = vsel %vm308, %v292, %v295
        %v313 = vsel %vm311, %v301, 2102212464
        %v314 = vsel %vm310, %v298, %v313
        %v315 = vsel %vm309, %v312, %v314
        %v316 = vsel %vm308, %v295, %v298
        %v317 = vsel %vm311, %v304, 920167782
        %v318 = vsel %vm310, %v301, %v317
        %v319 = vsel %vm309, %v316, %v318
        %v320 = vsel %vm308, %v298, %v301
        %v321 = vsel %vm311, %v307, 1326507024
        %v322 = vsel %vm310, %v304, %v321
        %v323 = vsel %vm309, %v320, %v322
        %v324 = vshll.u32 %v284, 8
        %v325 = vmul.u32.u64.compose %v324, %v323
        %v326 = vextract.low.u32 %v325
        %v327 = vextract.high.u32 %v325
        %v328 = vmul.u32.u64.compose %v324, %v319
        %v329 = vextract.low.u32 %v328
        %v330 = vextract.high.u32 %v328
        %v331 = vmul.u32 %v324, %v315
        %v332 = vadd.s32 %v327, %v329
        %vm333 = vc.u32 %v327, %v329
        %v334 = vadd.s32 %v330, 1
        %v335 = vsel %vm333, %v334, %v330
        %v336 = vadd.s32 %v331, %v335
        %v337 = vadd.s32 %v336, 536870912
        %v338 = vshrl.u32 %v337, 30
        %v339 = vshll.u32 %v338, 30
        %v340 = vsub.s32 %v336, %v339
        %vm341 = vcmp.lt.s32.totalorder %v340, 0
        %v342 = vsub.s32 0, %v340
        %v343 = vsel %vm341, %v342, %v340
        %v344 = vclz %v343
        %v345 = vsub.s32 %v344, 2
        %vm346 = vcmp.gt.s32.totalorder 0, %v345
        %v347 = vsel %vm346, 0, %v345
        %v348 = vsub.s32 32, %v347
        %v349 = vshll.u32 %v340, %v347
        %v350 = vshrl.u32 %v332, %v348
        %v351 = vor.u32 %v349, %v350
        %v352 = vsub.s32 4294967266, %v347
        %v353 = vadd.s32 %v352, 127
        %v354 = vshll.u32 %v353, 23
        %v355 = vor.u32 4788187, %v354
        %v356 = vand.u32 2147483647, %v355
        %v358 = vcvt.s32.f32 %v351
        %v359 = vmul.f32 %v358, %v356
        %v360 = vxor.u32 %v359, 2147483648
        %v361 = vsel %vm278, %v360, %v359
        %v362 = vsub.s32 4, %v338
        %v363 = vsel %vm278, %v362, %v338
        %v364 = vsel %vm277, %v239, %v361
        %v365 = vsel %vm277, 0, %v363
        %v366 = vcosq.f32.pop %v364
        %v367 = vsinq.f32.pop %v364
        %vm368 = vweird.f32 %v239
        %v369 = vand.u32 %v365, 3
        %vm370 = vcmp.lt.s32.totalorder %v369, 2
        %vm371 = vcmp.eq.s32.totalorder %v369, 0
        %v372 = vxor.u32 %v367, 2147483648
        %v373 = vsel %vm371, %v366, %v372
        %vm374 = vcmp.eq.s32.totalorder %v369, 2
        %v375 = vxor.u32 %v366, 2147483648
        %v376 = vsel %vm374, %v375, %v367
        %v377 = vsel %vm370, %v373, %v376
        %v378 = vsel %vm368, nan, %v377
        %v379 = vmul.f32 %v378, %v275
        %v380 = vadd.f32 %v379, 0.0
        %v381 = vand.u32 2147483647, %v239
        %vm382 = vcmp.le.f32.partialorder %v381, 0.7853982
        %vm383 = vcmp.lt.s32.totalorder %v239, 0
        %v384 = vand.u32 %v239, 2139095040
        %v385 = vshrl.u32 %v384, 23
        %v386 = vsub.s32 %v385, 127
        %v387 = vand.u32 2147483647, %v239
        %v388 = vand.u32 %v387, 8388607
        %v389 = vor.u32 %v388, 8388608
        %v390 = vsub.s32 0, %v389
        %v391 = vadd.s32 %v386, 1
        %vm392 = vcmp.gt.s32.totalorder %v391, 0
        %v393 = vsel %vm392, %v391, 0
        %v394 = vshrl.u32 %v393, 5
        %v395 = vand.u32 %v393, 31
        %v396 = vsub.s32 32, %v395
        %v397 = vshrl.u32 683565275, %v396
        %v398 = vshll.u32 683565275, %v395
        %v399 = vshrl.u32 2475754826, %v396
        %v400 = vor.u32 %v398, %v399
        %v401 = vshll.u32 2475754826, %v395
        %v402 = vshrl.u32 2131351028, %v396
        %v403 = vor.u32 %v401, %v402
        %v404 = vshll.u32 2131351028, %v395
        %v405 = vshrl.u32 2102212464, %v396
        %v406 = vor.u32 %v404, %v405
        %v407 = vshll.u32 2102212464, %v395
        %v408 = vshrl.u32 920167782, %v396
        %v409 = vor.u32 %v407, %v408
        %v410 = vshll.u32 920167782, %v395
        %v411 = vshrl.u32 1326507024, %v396
        %v412 = vor.u32 %v410, %v411
        %vm413 = vcmp.lt.s32.totalorder %v394, 1
        %vm414 = vcmp.lt.s32.totalorder %v394, 2
        %vm415 = vcmp.lt.s32.totalorder %v394, 3
        %vm416 = vcmp.lt.s32.totalorder %v394, 4
        %v417 = vsel %vm413, %v397, %v400
        %v418 = vsel %vm416, %v406, 2102212464
        %v419 = vsel %vm415, %v403, %v418
        %v420 = vsel %vm414, %v417, %v419
        %v421 = vsel %vm413, %v400, %v403
        %v422 = vsel %vm416, %v409, 920167782
        %v423 = vsel %vm415, %v406, %v422
        %v424 = vsel %vm414, %v421, %v423
        %v425 = vsel %vm413, %v403, %v406
        %v426 = vsel %vm416, %v412, 1326507024
        %v427 = vsel %vm415, %v409, %v426
        %v428 = vsel %vm414, %v425, %v427
        %v429 = vshll.u32 %v389, 8
        %v430 = vmul.u32.u64.compose %v429, %v428
        %v431 = vextract.low.u32 %v430
        %v432 = vextract.high.u32 %v430
        %v433 = vmul.u32.u64.compose %v429, %v424
        %v434 = vextract.low.u32 %v433
        %v435 = vextract.high.u32 %v433
        %v436 = vmul.u32 %v429, %v420
        %v437 = vadd.s32 %v432, %v434
        %vm438 = vc.u32 %v432, %v434
        %v439 = vadd.s32 %v435, 1
        %v440 = vsel %vm438, %v439, %v435
        %v441 = vadd.s32 %v436, %v440
        %v442 = vadd.s32 %v441, 536870912
        %v443 = vshrl.u32 %v442, 30
        %v444 = vshll.u32 %v443, 30
        %v445 = vsub.s32 %v441, %v444
        %vm446 = vcmp.lt.s32.totalorder %v445, 0
        %v447 = vsub.s32 0, %v445
        %v448 = vsel %vm446, %v447, %v445
        %v449 = vclz %v448
        %v450 = vsub.s32 %v449, 2
        %vm451 = vcmp.gt.s32.totalorder 0, %v450
        %v452 = vsel %vm451, 0, %v450
        %v453 = vsub.s32 32, %v452
        %v454 = vshll.u32 %v445, %v452
        %v455 = vshrl.u32 %v437, %v453
        %v456 = vor.u32 %v454, %v455
        %v457 = vsub.s32 4294967266, %v452
        %v458 = vadd.s32 %v457, 127
        %v459 = vshll.u32 %v458, 23
        %v460 = vor.u32 4788187, %v459
        %v461 = vand.u32 2147483647, %v460
        %v463 = vcvt.s32.f32 %v456
        %v464 = vmul.f32 %v463, %v461
        %v465 = vxor.u32 %v464, 2147483648
        %v466 = vsel %vm383, %v465, %v464
        %v467 = vsub.s32 4, %v443
        %v468 = vsel %vm383, %v467, %v443
        %v469 = vsel %vm382, %v239, %v466
        %v470 = vsel %vm382, 0, %v468
        %v471 = vcosq.f32.pop %v469
        %v472 = vsinq.f32.pop %v469
        %vm473 = vweird.f32 %v239
        %v474 = vadd.s32 %v470, 3
        %v475 = vand.u32 %v474, 3
        %vm476 = vcmp.lt.s32.totalorder %v475, 2
        %vm477 = vcmp.eq.s32.totalorder %v475, 0
        %v478 = vxor.u32 %v472, 2147483648
        %v479 = vsel %vm477, %v471, %v478
        %vm480 = vcmp.eq.s32.totalorder %v475, 2
        %v481 = vxor.u32 %v471, 2147483648
        %v482 = vsel %vm480, %v481, %v472
        %v483 = vsel %vm476, %v479, %v482
        %v484 = vsel %vm473, nan, %v483
        %v485 = vmul.f32 %v484, %v275
        %v486 = vsub.f32 0.0, %v485
        %v487 = vmul.f32 %v270, %v268
        %v488 = vrcp.pop %v487
        %v489 = vmul.f32 %v487, %v488
        %v490 = vsub.f32 2.0, %v489
        %v491 = vmul.f32 %v488, %v490
        %v492 = vsub.f32 0.0, %v491
        %v493 = vand.u32 2147483647, %v253
        %vm494 = vcmp.le.f32.partialorder %v493, 0.7853982
        %vm495 = vcmp.lt.s32.totalorder %v253, 0
        %v496 = vand.u32 %v253, 2139095040
        %v497 = vshrl.u32 %v496, 23
        %v498 = vsub.s32 %v497, 127
        %v499 = vand.u32 2147483647, %v253
        %v500 = vand.u32 %v499, 8388607
        %v501 = vor.u32 %v500, 8388608
        %v502 = vsub.s32 0, %v501
        %v503 = vadd.s32 %v498, 1
        %vm504 = vcmp.gt.s32.totalorder %v503, 0
        %v505 = vsel %vm504, %v503, 0
        %v506 = vshrl.u32 %v505, 5
        %v507 = vand.u32 %v505, 31
        %v508 = vsub.s32 32, %v507
        %v509 = vshrl.u32 683565275, %v508
        %v510 = vshll.u32 683565275, %v507
        %v511 = vshrl.u32 2475754826, %v508
        %v512 = vor.u32 %v510, %v511
        %v513 = vshll.u32 2475754826, %v507
        %v514 = vshrl.u32 2131351028, %v508
        %v515 = vor.u32 %v513, %v514
        %v516 = vshll.u32 2131351028, %v507
        %v517 = vshrl.u32 2102212464, %v508
        %v518 = vor.u32 %v516, %v517
        %v519 = vshll.u32 2102212464, %v507
        %v520 = vshrl.u32 920167782, %v508
        %v521 = vor.u32 %v519, %v520
        %v522 = vshll.u32 920167782, %v507
        %v523 = vshrl.u32 1326507024, %v508
        %v524 = vor.u32 %v522, %v523
        %vm525 = vcmp.lt.s32.totalorder %v506, 1
        %vm526 = vcmp.lt.s32.totalorder %v506, 2
        %vm527 = vcmp.lt.s32.totalorder %v506, 3
        %vm528 = vcmp.lt.s32.totalorder %v506, 4
        %v529 = vsel %vm525, %v509, %v512
        %v530 = vsel %vm528, %v518, 2102212464
        %v531 = vsel %vm527, %v515, %v530
        %v532 = vsel %vm526, %v529, %v531
        %v533 = vsel %vm525, %v512, %v515
        %v534 = vsel %vm528, %v521, 920167782
        %v535 = vsel %vm527, %v518, %v534
        %v536 = vsel %vm526, %v533, %v535
        %v537 = vsel %vm525, %v515, %v518
        %v538 = vsel %vm528, %v524, 1326507024
        %v539 = vsel %vm527, %v521, %v538
        %v540 = vsel %vm526, %v537, %v539
        %v541 = vshll.u32 %v501, 8
        %v542 = vmul.u32.u64.compose %v541, %v540
        %v543 = vextract.low.u32 %v542
        %v544 = vextract.high.u32 %v542
        %v545 = vmul.u32.u64.compose %v541, %v536
        %v546 = vextract.low.u32 %v545
        %v547 = vextract.high.u32 %v545
        %v548 = vmul.u32 %v541, %v532
        %v549 = vadd.s32 %v544, %v546
        %vm550 = vc.u32 %v544, %v546
        %v551 = vadd.s32 %v547, 1
        %v552 = vsel %vm550, %v551, %v547
        %v553 = vadd.s32 %v548, %v552
        %v554 = vadd.s32 %v553, 536870912
        %v555 = vshrl.u32 %v554, 30
        %v556 = vshll.u32 %v555, 30
        %v557 = vsub.s32 %v553, %v556
        %vm558 = vcmp.lt.s32.totalorder %v557, 0
        %v559 = vsub.s32 0, %v557
        %v560 = vsel %vm558, %v559, %v557
        %v561 = vclz %v560
        %v562 = vsub.s32 %v561, 2
        %vm563 = vcmp.gt.s32.totalorder 0, %v562
        %v564 = vsel %vm563, 0, %v562
        %v565 = vsub.s32 32, %v564
        %v566 = vshll.u32 %v557, %v564
        %v567 = vshrl.u32 %v549, %v565
        %v568 = vor.u32 %v566, %v567
        %v569 = vsub.s32 4294967266, %v564
        %v570 = vadd.s32 %v569, 127
        %v571 = vshll.u32 %v570, 23
        %v572 = vor.u32 4788187, %v571
        %v573 = vand.u32 2147483647, %v572
        %v575 = vcvt.s32.f32 %v568
        %v576 = vmul.f32 %v575, %v573
        %v577 = vxor.u32 %v576, 2147483648
        %v578 = vsel %vm495, %v577, %v576
        %v579 = vsub.s32 4, %v555
        %v580 = vsel %vm495, %v579, %v555
        %v581 = vsel %vm494, %v253, %v578
        %v582 = vsel %vm494, 0, %v580
        %v583 = vcosq.f32.pop %v581
        %v584 = vsinq.f32.pop %v581
        %vm585 = vweird.f32 %v253
        %v586 = vand.u32 %v582, 3
        %vm587 = vcmp.lt.s32.totalorder %v586, 2
        %vm588 = vcmp.eq.s32.totalorder %v586, 0
        %v589 = vxor.u32 %v584, 2147483648
        %v590 = vsel %vm588, %v583, %v589
        %vm591 = vcmp.eq.s32.totalorder %v586, 2
        %v592 = vxor.u32 %v583, 2147483648
        %v593 = vsel %vm591, %v592, %v584
        %v594 = vsel %vm587, %v590, %v593
        %v595 = vsel %vm585, nan, %v594
        %v596 = vmul.f32 %v595, %v492
        %v597 = vadd.f32 %v380, %v596
        %v598 = vand.u32 2147483647, %v253
        %vm599 = vcmp.le.f32.partialorder %v598, 0.7853982
        %vm600 = vcmp.lt.s32.totalorder %v253, 0
        %v601 = vand.u32 %v253, 2139095040
        %v602 = vshrl.u32 %v601, 23
        %v603 = vsub.s32 %v602, 127
        %v604 = vand.u32 2147483647, %v253
        %v605 = vand.u32 %v604, 8388607
        %v606 = vor.u32 %v605, 8388608
        %v607 = vsub.s32 0, %v606
        %v608 = vadd.s32 %v603, 1
        %vm609 = vcmp.gt.s32.totalorder %v608, 0
        %v610 = vsel %vm609, %v608, 0
        %v611 = vshrl.u32 %v610, 5
        %v612 = vand.u32 %v610, 31
        %v613 = vsub.s32 32, %v612
        %v614 = vshrl.u32 683565275, %v613
        %v615 = vshll.u32 683565275, %v612
        %v616 = vshrl.u32 2475754826, %v613
        %v617 = vor.u32 %v615, %v616
        %v618 = vshll.u32 2475754826, %v612
        %v619 = vshrl.u32 2131351028, %v613
        %v620 = vor.u32 %v618, %v619
        %v621 = vshll.u32 2131351028, %v612
        %v622 = vshrl.u32 2102212464, %v613
        %v623 = vor.u32 %v621, %v622
        %v624 = vshll.u32 2102212464, %v612
        %v625 = vshrl.u32 920167782, %v613
        %v626 = vor.u32 %v624, %v625
        %v627 = vshll.u32 920167782, %v612
        %v628 = vshrl.u32 1326507024, %v613
        %v629 = vor.u32 %v627, %v628
        %vm630 = vcmp.lt.s32.totalorder %v611, 1
        %vm631 = vcmp.lt.s32.totalorder %v611, 2
        %vm632 = vcmp.lt.s32.totalorder %v611, 3
        %vm633 = vcmp.lt.s32.totalorder %v611, 4
        %v634 = vsel %vm630, %v614, %v617
        %v635 = vsel %vm633, %v623, 2102212464
        %v636 = vsel %vm632, %v620, %v635
        %v637 = vsel %vm631, %v634, %v636
        %v638 = vsel %vm630, %v617, %v620
        %v639 = vsel %vm633, %v626, 920167782
        %v640 = vsel %vm632, %v623, %v639
        %v641 = vsel %vm631, %v638, %v640
        %v642 = vsel %vm630, %v620, %v623
        %v643 = vsel %vm633, %v629, 1326507024
        %v644 = vsel %vm632, %v626, %v643
        %v645 = vsel %vm631, %v642, %v644
        %v646 = vshll.u32 %v606, 8
        %v647 = vmul.u32.u64.compose %v646, %v645
        %v648 = vextract.low.u32 %v647
        %v649 = vextract.high.u32 %v647
        %v650 = vmul.u32.u64.compose %v646, %v641
        %v651 = vextract.low.u32 %v650
        %v652 = vextract.high.u32 %v650
        %v653 = vmul.u32 %v646, %v637
        %v654 = vadd.s32 %v649, %v651
        %vm655 = vc.u32 %v649, %v651
        %v656 = vadd.s32 %v652, 1
        %v657 = vsel %vm655, %v656, %v652
        %v658 = vadd.s32 %v653, %v657
        %v659 = vadd.s32 %v658, 536870912
        %v660 = vshrl.u32 %v659, 30
        %v661 = vshll.u32 %v660, 30
        %v662 = vsub.s32 %v658, %v661
        %vm663 = vcmp.lt.s32.totalorder %v662, 0
        %v664 = vsub.s32 0, %v662
        %v665 = vsel %vm663, %v664, %v662
        %v666 = vclz %v665
        %v667 = vsub.s32 %v666, 2
        %vm668 = vcmp.gt.s32.totalorder 0, %v667
        %v669 = vsel %vm668, 0, %v667
        %v670 = vsub.s32 32, %v669
        %v671 = vshll.u32 %v662, %v669
        %v672 = vshrl.u32 %v654, %v670
        %v673 = vor.u32 %v671, %v672
        %v674 = vsub.s32 4294967266, %v669
        %v675 = vadd.s32 %v674, 127
        %v676 = vshll.u32 %v675, 23
        %v677 = vor.u32 4788187, %v676
        %v678 = vand.u32 2147483647, %v677
        %v680 = vcvt.s32.f32 %v673
        %v681 = vmul.f32 %v680, %v678
        %v682 = vxor.u32 %v681, 2147483648
        %v683 = vsel %vm600, %v682, %v681
        %v684 = vsub.s32 4, %v660
        %v685 = vsel %vm600, %v684, %v660
        %v686 = vsel %vm599, %v253, %v683
        %v687 = vsel %vm599, 0, %v685
        %v688 = vcosq.f32.pop %v686
        %v689 = vsinq.f32.pop %v686
        %vm690 = vweird.f32 %v253
        %v691 = vadd.s32 %v687, 3
        %v692 = vand.u32 %v691, 3
        %vm693 = vcmp.lt.s32.totalorder %v692, 2
        %vm694 = vcmp.eq.s32.totalorder %v692, 0
        %v695 = vxor.u32 %v689, 2147483648
        %v696 = vsel %vm694, %v688, %v695
        %vm697 = vcmp.eq.s32.totalorder %v692, 2
        %v698 = vxor.u32 %v688, 2147483648
        %v699 = vsel %vm697, %v698, %v689
        %v700 = vsel %vm693, %v696, %v699
        %v701 = vsel %vm690, nan, %v700
        %v702 = vmul.f32 %v701, %v492
        %v703 = vsub.f32 %v486, %v702
        %v704 = vmul.f32 %v269, %v270
        %v705 = vrcp.pop %v704
        %v706 = vmul.f32 %v704, %v705
        %v707 = vsub.f32 2.0, %v706
        %v708 = vmul.f32 %v705, %v707
        %v709 = vand.u32 2147483647, %v267
        %vm710 = vcmp.le.f32.partialorder %v709, 0.7853982
        %vm711 = vcmp.lt.s32.totalorder %v267, 0
        %v712 = vand.u32 %v267, 2139095040
        %v713 = vshrl.u32 %v712, 23
        %v714 = vsub.s32 %v713, 127
        %v715 = vand.u32 2147483647, %v267
        %v716 = vand.u32 %v715, 8388607
        %v717 = vor.u32 %v716, 8388608
        %v718 = vsub.s32 0, %v717
        %v719 = vadd.s32 %v714, 1
        %vm720 = vcmp.gt.s32.totalorder %v719, 0
        %v721 = vsel %vm720, %v719, 0
        %v722 = vshrl.u32 %v721, 5
        %v723 = vand.u32 %v721, 31
        %v724 = vsub.s32 32, %v723
        %v725 = vshrl.u32 683565275, %v724
        %v726 = vshll.u32 683565275, %v723
        %v727 = vshrl.u32 2475754826, %v724
        %v728 = vor.u32 %v726, %v727
        %v729 = vshll.u32 2475754826, %v723
        %v730 = vshrl.u32 2131351028, %v724
        %v731 = vor.u32 %v729, %v730
        %v732 = vshll.u32 2131351028, %v723
        %v733 = vshrl.u32 2102212464, %v724
        %v734 = vor.u32 %v732, %v733
        %v735 = vshll.u32 2102212464, %v723
        %v736 = vshrl.u32 920167782, %v724
        %v737 = vor.u32 %v735, %v736
        %v738 = vshll.u32 920167782, %v723
        %v739 = vshrl.u32 1326507024, %v724
        %v740 = vor.u32 %v738, %v739
        %vm741 = vcmp.lt.s32.totalorder %v722, 1
        %vm742 = vcmp.lt.s32.totalorder %v722, 2
        %vm743 = vcmp.lt.s32.totalorder %v722, 3
        %vm744 = vcmp.lt.s32.totalorder %v722, 4
        %v745 = vsel %vm741, %v725, %v728
        %v746 = vsel %vm744, %v734, 2102212464
        %v747 = vsel %vm743, %v731, %v746
        %v748 = vsel %vm742, %v745, %v747
        %v749 = vsel %vm741, %v728, %v731
        %v750 = vsel %vm744, %v737, 920167782
        %v751 = vsel %vm743, %v734, %v750
        %v752 = vsel %vm742, %v749, %v751
        %v753 = vsel %vm741, %v731, %v734
        %v754 = vsel %vm744, %v740, 1326507024
        %v755 = vsel %vm743, %v737, %v754
        %v756 = vsel %vm742, %v753, %v755
        %v757 = vshll.u32 %v717, 8
        %v758 = vmul.u32.u64.compose %v757, %v756
        %v759 = vextract.low.u32 %v758
        %v760 = vextract.high.u32 %v758
        %v761 = vmul.u32.u64.compose %v757, %v752
        %v762 = vextract.low.u32 %v761
        %v763 = vextract.high.u32 %v761
        %v764 = vmul.u32 %v757, %v748
        %v765 = vadd.s32 %v760, %v762
        %vm766 = vc.u32 %v760, %v762
        %v767 = vadd.s32 %v763, 1
        %v768 = vsel %vm766, %v767, %v763
        %v769 = vadd.s32 %v764, %v768
        %v770 = vadd.s32 %v769, 536870912
        %v771 = vshrl.u32 %v770, 30
        %v772 = vshll.u32 %v771, 30
        %v773 = vsub.s32 %v769, %v772
        %vm774 = vcmp.lt.s32.totalorder %v773, 0
        %v775 = vsub.s32 0, %v773
        %v776 = vsel %vm774, %v775, %v773
        %v777 = vclz %v776
        %v778 = vsub.s32 %v777, 2
        %vm779 = vcmp.gt.s32.totalorder 0, %v778
        %v780 = vsel %vm779, 0, %v778
        %v781 = vsub.s32 32, %v780
        %v782 = vshll.u32 %v773, %v780
        %v783 = vshrl.u32 %v765, %v781
        %v784 = vor.u32 %v782, %v783
        %v785 = vsub.s32 4294967266, %v780
        %v786 = vadd.s32 %v785, 127
        %v787 = vshll.u32 %v786, 23
        %v788 = vor.u32 4788187, %v787
        %v789 = vand.u32 2147483647, %v788
        %v791 = vcvt.s32.f32 %v784
        %v792 = vmul.f32 %v791, %v789
        %v793 = vxor.u32 %v792, 2147483648
        %v794 = vsel %vm711, %v793, %v792
        %v795 = vsub.s32 4, %v771
        %v796 = vsel %vm711, %v795, %v771
        %v797 = vsel %vm710, %v267, %v794
        %v798 = vsel %vm710, 0, %v796
        %v799 = vcosq.f32.pop %v797
        %v800 = vsinq.f32.pop %v797
        %vm801 = vweird.f32 %v267
        %v802 = vand.u32 %v798, 3
        %vm803 = vcmp.lt.s32.totalorder %v802, 2
        %vm804 = vcmp.eq.s32.totalorder %v802, 0
        %v805 = vxor.u32 %v800, 2147483648
        %v806 = vsel %vm804, %v799, %v805
        %vm807 = vcmp.eq.s32.totalorder %v802, 2
        %v808 = vxor.u32 %v799, 2147483648
        %v809 = vsel %vm807, %v808, %v800
        %v810 = vsel %vm803, %v806, %v809
        %v811 = vsel %vm801, nan, %v810
        %v812 = vmul.f32 %v811, %v708
        %v813 = vadd.f32 %v597, %v812
        %v814 = vand.u32 2147483647, %v267
        %vm815 = vcmp.le.f32.partialorder %v814, 0.7853982
        %vm816 = vcmp.lt.s32.totalorder %v267, 0
        %v817 = vand.u32 %v267, 2139095040
        %v818 = vshrl.u32 %v817, 23
        %v819 = vsub.s32 %v818, 127
        %v820 = vand.u32 2147483647, %v267
        %v821 = vand.u32 %v820, 8388607
        %v822 = vor.u32 %v821, 8388608
        %v823 = vsub.s32 0, %v822
        %v824 = vadd.s32 %v819, 1
        %vm825 = vcmp.gt.s32.totalorder %v824, 0
        %v826 = vsel %vm825, %v824, 0
        %v827 = vshrl.u32 %v826, 5
        %v828 = vand.u32 %v826, 31
        %v829 = vsub.s32 32, %v828
        %v830 = vshrl.u32 683565275, %v829
        %v831 = vshll.u32 683565275, %v828
        %v832 = vshrl.u32 2475754826, %v829
        %v833 = vor.u32 %v831, %v832
        %v834 = vshll.u32 2475754826, %v828
        %v835 = vshrl.u32 2131351028, %v829
        %v836 = vor.u32 %v834, %v835
        %v837 = vshll.u32 2131351028, %v828
        %v838 = vshrl.u32 2102212464, %v829
        %v839 = vor.u32 %v837, %v838
        %v840 = vshll.u32 2102212464, %v828
        %v841 = vshrl.u32 920167782, %v829
        %v842 = vor.u32 %v840, %v841
        %v843 = vshll.u32 920167782, %v828
        %v844 = vshrl.u32 1326507024, %v829
        %v845 = vor.u32 %v843, %v844
        %vm846 = vcmp.lt.s32.totalorder %v827, 1
        %vm847 = vcmp.lt.s32.totalorder %v827, 2
        %vm848 = vcmp.lt.s32.totalorder %v827, 3
        %vm849 = vcmp.lt.s32.totalorder %v827, 4
        %v850 = vsel %vm846, %v830, %v833
        %v851 = vsel %vm849, %v839, 2102212464
        %v852 = vsel %vm848, %v836, %v851
        %v853 = vsel %vm847, %v850, %v852
        %v854 = vsel %vm846, %v833, %v836
        %v855 = vsel %vm849, %v842, 920167782
        %v856 = vsel %vm848, %v839, %v855
        %v857 = vsel %vm847, %v854, %v856
        %v858 = vsel %vm846, %v836, %v839
        %v859 = vsel %vm849, %v845, 1326507024
        %v860 = vsel %vm848, %v842, %v859
        %v861 = vsel %vm847, %v858, %v860
        %v862 = vshll.u32 %v822, 8
        %v863 = vmul.u32.u64.compose %v862, %v861
        %v864 = vextract.low.u32 %v863
        %v865 = vextract.high.u32 %v863
        %v866 = vmul.u32.u64.compose %v862, %v857
        %v867 = vextract.low.u32 %v866
        %v868 = vextract.high.u32 %v866
        %v869 = vmul.u32 %v862, %v853
        %v870 = vadd.s32 %v865, %v867
        %vm871 = vc.u32 %v865, %v867
        %v872 = vadd.s32 %v868, 1
        %v873 = vsel %vm871, %v872, %v868
        %v874 = vadd.s32 %v869, %v873
        %v875 = vadd.s32 %v874, 536870912
        %v876 = vshrl.u32 %v875, 30
        %v877 = vshll.u32 %v876, 30
        %v878 = vsub.s32 %v874, %v877
        %vm879 = vcmp.lt.s32.totalorder %v878, 0
        %v880 = vsub.s32 0, %v878
        %v881 = vsel %vm879, %v880, %v878
        %v882 = vclz %v881
        %v883 = vsub.s32 %v882, 2
        %vm884 = vcmp.gt.s32.totalorder 0, %v883
        %v885 = vsel %vm884, 0, %v883
        %v886 = vsub.s32 32, %v885
        %v887 = vshll.u32 %v878, %v885
        %v888 = vshrl.u32 %v870, %v886
        %v889 = vor.u32 %v887, %v888
        %v890 = vsub.s32 4294967266, %v885
        %v891 = vadd.s32 %v890, 127
        %v892 = vshll.u32 %v891, 23
        %v893 = vor.u32 4788187, %v892
        %v894 = vand.u32 2147483647, %v893
        %v896 = vcvt.s32.f32 %v889
        %v897 = vmul.f32 %v896, %v894
        %v898 = vxor.u32 %v897, 2147483648
        %v899 = vsel %vm816, %v898, %v897
        %v900 = vsub.s32 4, %v876
        %v901 = vsel %vm816, %v900, %v876
        %v902 = vsel %vm815, %v267, %v899
        %v903 = vsel %vm815, 0, %v901
        %v904 = vcosq.f32.pop %v902
        %v905 = vsinq.f32.pop %v902
        %vm906 = vweird.f32 %v267
        %v907 = vadd.s32 %v903, 3
        %v908 = vand.u32 %v907, 3
        %vm909 = vcmp.lt.s32.totalorder %v908, 2
        %vm910 = vcmp.eq.s32.totalorder %v908, 0
        %v911 = vxor.u32 %v905, 2147483648
        %v912 = vsel %vm910, %v904, %v911
        %vm913 = vcmp.eq.s32.totalorder %v908, 2
        %v914 = vxor.u32 %v904, 2147483648
        %v915 = vsel %vm913, %v914, %v905
        %v916 = vsel %vm909, %v912, %v915
        %v917 = vsel %vm906, nan, %v916
        %v918 = vmul.f32 %v917, %v708
        %v919 = vsub.f32 %v703, %v918
        %v920 = vld [vmem:[%s211] sm:$0xff]
        %v921 = vld [vmem:[%s199] sm:$0xff]
        %vm922 = vcmask 64512
        %v924 = vsel %vm922, %v920, 0
        %926 = vmatprep.subr.mxu0 0.0
        %927 = vmatpush1.msra.mxu0 0.0
        %928 = vmatprep.subr.mxu0 0.0
        %929 = vmatpush1.msra.mxu0 0.0
        %930 = vmatprep.subr.mxu0 0.0
        %931 = vmatpush1.msra.mxu0 0.0
        %932 = vmatprep.subr.mxu0 0.0
        %933 = vmatpush1.msra.mxu0 0.0
        %934 = vmatprep.subr.mxu0 0.0
        %935 = vmatpush1.msra.mxu0 0.0
        %936 = vmatprep.subr.mxu0 0.0
        %937 = vmatpush1.msra.mxu0 0.0
        %938 = vmatprep.subr.mxu0 0.0
        %939 = vmatpush1.msra.mxu0 0.0
        %940 = vmatprep.subr.mxu0 0.0
        %941 = vmatpush1.msra.mxu0 0.0
        %942 = vmatprep.subr.mxu0 0.0
        %943 = vmatpush1.msra.mxu0 0.0
        %944 = vmatprep.subr.mxu0 0.0
        %945 = vmatpush1.msra.mxu0 0.0
        %946 = vmatprep.subr.mxu0 0.0
        %947 = vmatpush1.msra.mxu0 0.0
        %948 = vmatprep.subr.mxu0 0.0
        %949 = vmatpush1.msra.mxu0 0.0
        %950 = vmatprep.subr.mxu0 0.0
        %951 = vmatpush1.msra.mxu0 0.0
        %952 = vmatprep.subr.mxu0 0.0
        %953 = vmatpush1.msra.mxu0 0.0
        %954 = vmatprep.subr.mxu0 0.0
        %955 = vmatpush1.msra.mxu0 0.0
        %956 = vmatprep.subr.mxu0 0.0
        %957 = vmatpush1.msra.mxu0 %v813
        %958 = vmatprep.subr.mxu0 0.0
        %959 = vmatpush2.msra.mxu0 0.0
        %960 = vmatprep.subr.mxu0 0.0
        %961 = vmatpush2.msra.mxu0 0.0
        %962 = vmatprep.subr.mxu0 0.0
        %963 = vmatpush2.msra.mxu0 0.0
        %964 = vmatprep.subr.mxu0 0.0
        %965 = vmatpush2.msra.mxu0 0.0
        %966 = vmatprep.subr.mxu0 0.0
        %967 = vmatpush2.msra.mxu0 0.0
        %968 = vmatprep.subr.mxu0 0.0
        %969 = vmatpush2.msra.mxu0 0.0
        %970 = vmatprep.subr.mxu0 0.0
        %971 = vmatpush2.msra.mxu0 0.0
        %972 = vmatprep.subr.mxu0 0.0
        %973 = vmatpush2.msra.mxu0 0.0
        %974 = vmatprep.subr.mxu0 0.0
        %975 = vmatpush2.msra.mxu0 0.0
        %976 = vmatprep.subr.mxu0 0.0
        %977 = vmatpush2.msra.mxu0 0.0
        %978 = vmatprep.subr.mxu0 0.0
        %979 = vmatpush2.msra.mxu0 0.0
        %980 = vmatprep.subr.mxu0 0.0
        %981 = vmatpush2.msra.mxu0 0.0
        %982 = vmatprep.subr.mxu0 0.0
        %983 = vmatpush2.msra.mxu0 0.0
        %984 = vmatprep.subr.mxu0 0.0
        %985 = vmatpush2.msra.mxu0 0.0
        %986 = vmatprep.subr.mxu0 0.0
        %987 = vmatpush2.msra.mxu0 0.0
        %988 = vmatprep.subr.mxu0 0.0
        %989 = vmatpush2.msra.mxu0 0.0
        %990 = vmatprep.mubr.f32.mxu0 0.0
        %991 = vmatmul.mubr.f32.gmra.mxu0 %v924
        %v992 = vpop.f32.mrf.mxu0
        %v993 = vadd.f32 0.0, %v992
        %v994 = vpop.f32.mrf.mxu0
        %995 = vdwg.mxu0
        %v996 = vadd.f32 %v921, %v993
        %997 = vst [vmem:[%s199] sm:$0xff] %v996
        %s998 = scalar_lea.vmem %s199, 8 [#allocation2]
        %v999 = vld [vmem:[%s998] sm:$0xff]
        %1000 = vmatprep.subr.mxu0 0.0
        %1001 = vmatpush1.msra.mxu0 0.0
        %1002 = vmatprep.subr.mxu0 0.0
        %1003 = vmatpush1.msra.mxu0 0.0
        %1004 = vmatprep.subr.mxu0 0.0
        %1005 = vmatpush1.msra.mxu0 0.0
        %1006 = vmatprep.subr.mxu0 0.0
        %1007 = vmatpush1.msra.mxu0 0.0
        %1008 = vmatprep.subr.mxu0 0.0
        %1009 = vmatpush1.msra.mxu0 0.0
        %1010 = vmatprep.subr.mxu0 0.0
        %1011 = vmatpush1.msra.mxu0 0.0
        %1012 = vmatprep.subr.mxu0 0.0
        %1013 = vmatpush1.msra.mxu0 0.0
        %1014 = vmatprep.subr.mxu0 0.0
        %1015 = vmatpush1.msra.mxu0 0.0
        %1016 = vmatprep.subr.mxu0 0.0
        %1017 = vmatpush1.msra.mxu0 0.0
        %1018 = vmatprep.subr.mxu0 0.0
        %1019 = vmatpush1.msra.mxu0 0.0
        %1020 = vmatprep.subr.mxu0 0.0
        %1021 = vmatpush1.msra.mxu0 0.0
        %1022 = vmatprep.subr.mxu0 0.0
        %1023 = vmatpush1.msra.mxu0 0.0
        %1024 = vmatprep.subr.mxu0 0.0
        %1025 = vmatpush1.msra.mxu0 0.0
        %1026 = vmatprep.subr.mxu0 0.0
        %1027 = vmatpush1.msra.mxu0 0.0
        %1028 = vmatprep.subr.mxu0 0.0
        %1029 = vmatpush1.msra.mxu0 0.0
        %1030 = vmatprep.subr.mxu0 0.0
        %1031 = vmatpush1.msra.mxu0 %v919
        %1032 = vmatprep.subr.mxu0 0.0
        %1033 = vmatpush2.msra.mxu0 0.0
        %1034 = vmatprep.subr.mxu0 0.0
        %1035 = vmatpush2.msra.mxu0 0.0
        %1036 = vmatprep.subr.mxu0 0.0
        %1037 = vmatpush2.msra.mxu0 0.0
        %1038 = vmatprep.subr.mxu0 0.0
        %1039 = vmatpush2.msra.mxu0 0.0
        %1040 = vmatprep.subr.mxu0 0.0
        %1041 = vmatpush2.msra.mxu0 0.0
        %1042 = vmatprep.subr.mxu0 0.0
        %1043 = vmatpush2.msra.mxu0 0.0
        %1044 = vmatprep.subr.mxu0 0.0
        %1045 = vmatpush2.msra.mxu0 0.0
        %1046 = vmatprep.subr.mxu0 0.0
        %1047 = vmatpush2.msra.mxu0 0.0
        %1048 = vmatprep.subr.mxu0 0.0
        %1049 = vmatpush2.msra.mxu0 0.0
        %1050 = vmatprep.subr.mxu0 0.0
        %1051 = vmatpush2.msra.mxu0 0.0
        %1052 = vmatprep.subr.mxu0 0.0
        %1053 = vmatpush2.msra.mxu0 0.0
        %1054 = vmatprep.subr.mxu0 0.0
        %1055 = vmatpush2.msra.mxu0 0.0
        %1056 = vmatprep.subr.mxu0 0.0
        %1057 = vmatpush2.msra.mxu0 0.0
        %1058 = vmatprep.subr.mxu0 0.0
        %1059 = vmatpush2.msra.mxu0 0.0
        %1060 = vmatprep.subr.mxu0 0.0
        %1061 = vmatpush2.msra.mxu0 0.0
        %1062 = vmatprep.subr.mxu0 0.0
        %1063 = vmatpush2.msra.mxu0 0.0
        %1064 = vmatprep.mubr.f32.mxu0 0.0
        %1065 = vmatmul.mubr.f32.gmra.mxu0 %v924
        %v1066 = vpop.f32.mrf.mxu0
        %v1067 = vadd.f32 0.0, %v1066
        %v1068 = vpop.f32.mrf.mxu0
        %1069 = vdwg.mxu0
        %v1070 = vadd.f32 %v999, %v1067
        %1071 = vst [vmem:[%s998] sm:$0xff] %v1070
        %s1072 = sand.u32 %s115, 1
        %s1073 = scalar_lea.sflag [#allocation3], %s1072
        %s1074 = sand.u32 %s115, 1
        %s1075 = smul.addr %s1074, 16
        %s1076 = scalar_lea.vmem [#allocation2], %s1075
        // Predicated region
        $region37: #{tpu_custom_call.1} parent=31 // pred_check
          %p1077 = pneg %p125
        $region38: #{tpu_custom_call.1} parent=31 // pred_check_branch
          %1079 = sbr.rel (%p1077) target = $region40
        $region39: #{tpu_custom_call.1} parent=31 // pred_region
          %s1081 = ssub.s32 256, 256
          %1082 = vsyncadd %s1073, %s1081
          %s1083 = smul.addr %s21, 128
          %s1084 = scalar_lea.hbm %s3, %s1083
          %s1085 = sshll.u32 %s1076, 4
          %s1086 = int_to_ptr.vmem [resolvable:$true] %s1085
          %1091 = dma.vmem_to_hbm [thread:$0]  %s1086, 256, %s1084, %s1073, 128, 256, 8
        $region40: #{tpu_custom_call.1} parent=31 // pred_fallthru
          _
      $region32: #{tpu_custom_call.1} parent=5 // pred_fallthru
        _
      %p1092 = scmp.le.s32.totalorder 2, %s12
      // Predicated region
      $region41: #{tpu_custom_call.1} parent=5 // pred_check
        %p1093 = pneg %p1092
      $region42: #{tpu_custom_call.1} parent=5 // pred_check_branch
        %1095 = sbr.rel (%p1093) target = $region44
      $region43: #{tpu_custom_call.1} parent=5 // pred_region
        %s1096 = ssub.s32 %s12, 2
        // Predicated region
        $region45: #{tpu_custom_call.1} parent=43 // pred_check
          %p1097 = pneg %p131
        $region46: #{tpu_custom_call.1} parent=43 // pred_check_branch
          %1099 = sbr.rel (%p1097) target = $region48
        $region47: #{tpu_custom_call.1} parent=43 // pred_region
          %s1100 = sand.u32 %s116, 1
          %s1101 = scalar_lea.sflag [#allocation3], %s1100
          %s1102 = sand.u32 %s116, 1
          %s1103 = smul.addr %s1102, 16
          %s1104 = scalar_lea.vmem [#allocation2], %s1103
          %1105 = dma.done %s1101, 256
        $region48: #{tpu_custom_call.1} parent=43 // pred_fallthru
          _
      $region44: #{tpu_custom_call.1} parent=5 // pred_fallthru
        _
    $region6: #{tpu_custom_call.1} parent=1 // loop_footer
      %s16 = sadd.s32 1, %s12
    $region7: #{tpu_custom_call.1} parent=1 // loop_footer_branch
      %11 = sbr.rel target = $region3
    $region8: #{tpu_custom_call.1} parent=1 // loop_exit
      _
    %1106 = vsyncpa [#allocation3], 1
    %s1107 = scalar_lea.sflag [#allocation3], 1
    %1108 = vsyncpa %s1107, 1

</llo_original>
